<compile_context>
chip_gen: v7x
topology: tpu7x:2x2x1
jax: 0.10.0
libtpu: 0.0.40
codegen_flags: <defaults>
</compile_context>

<pallas_src>
import functools

import jax
import jax.numpy as jnp
from jax import lax
from jax.experimental import pallas as pl
from jax.experimental.pallas import tpu as pltpu


LEAKY_SLOPE = 0.01   # PyTorch nn.LeakyReLU default negative_slope
NORM_EPS = 1e-12     # guards divide-by-zero in the pnorm path (negligible otherwise)


def _q_kernel(pnorm, obs_ref, act_ref, w1o_ref, w1a_ref, b1_ref,
              w2_ref, b2_ref, w3_ref, b3_ref, out_ref):
    """Forward pass of the Q MLP for one batch tile (tile_b rows)."""
    # Layer 1: fused concat ->  obs @ W1_obs + act @ W1_act + b1, then LeakyReLU.
    h = (jnp.dot(obs_ref[...], w1o_ref[...], preferred_element_type=jnp.float32)
         + jnp.dot(act_ref[...], w1a_ref[...], preferred_element_type=jnp.float32)
         + b1_ref[...])
    h = jnp.where(h > 0, h, LEAKY_SLOPE * h)

    # Layer 2: Linear + LeakyReLU.
    h = jnp.dot(h, w2_ref[...], preferred_element_type=jnp.float32) + b2_ref[...]
    h = jnp.where(h > 0, h, LEAKY_SLOPE * h)

    if pnorm:
        # phi / ||phi||_2 per row, via rsqrt (EUP) instead of sqrt + divide.
        inv_norm = lax.rsqrt(jnp.sum(h * h, axis=-1, keepdims=True) + NORM_EPS)
        h = h * inv_norm

    # Output head: (1, n_hid) contracted against (tile_b, n_hid) on its feature
    # axis -> (1, tile_b): batch rides the 128-lane axis, so the store is
    # lane-dense instead of a (tile_b, 1) masked column store.
    q = lax.dot_general(w3_ref[...], h,
                        dimension_numbers=(((1,), (1,)), ((), ())),
                        preferred_element_type=jnp.float32)
    out_ref[...] = q + b3_ref[...]


def q_forward(obs, action, params, pnorm=True, *, tile_b=128):
    """JAX wrapper: batch-tiled Pallas call, returns q of shape (B,)."""
    w1, b1, w2, b2, w3, b3 = params
    obs = obs.astype(jnp.float32)
    action = action.astype(jnp.float32)
    B, obs_dim = obs.shape
    action_dim = action.shape[1]
    n_hid = w1.shape[1]

    # Pad the batch to a multiple of the batch tile so every grid step sees a
    # full block (padded rows are computed and discarded; eps keeps them finite).
    n_tiles = pl.cdiv(B, tile_b)
    B_pad = n_tiles * tile_b
    if B_pad != B:
        pad = B_pad - B
        obs = jnp.pad(obs, ((0, pad), (0, 0)))
        action = jnp.pad(action, ((0, pad), (0, 0)))

    # Split W1 so the concat is fused into the kernel.
    w1_obs = w1[:obs_dim]
    w1_act = w1[obs_dim:]
    b1_r = b1.reshape(1, n_hid)
    b2_r = b2.reshape(1, n_hid)
    w3_r = w3.reshape(1, n_hid)          # head weights as a (1, n_hid) row
    b3_r = b3.reshape(1, 1)

    # Advisory cost estimate for the XLA scheduler.
    flops = 2 * B_pad * ((obs_dim + action_dim) * n_hid + n_hid * n_hid + n_hid)
    act_bytes = (obs.size + action.size) * 4
    weight_bytes = (w1.size + b1.size + w2.size + b2.size + w3.size + b3.size) * 4
    cost = pl.CostEstimate(flops=flops,
                           transcendentals=B_pad if pnorm else 0,
                           bytes_accessed=act_bytes + weight_bytes + B_pad * 4)

    const2d = lambda i: (0, 0)   # weights/biases: same block every step -> resident

    grid_spec = pltpu.PrefetchScalarGridSpec(
        num_scalar_prefetch=0,
        grid=(n_tiles,),
        in_specs=[
            pl.BlockSpec((tile_b, obs_dim), lambda i: (i, 0)),      # obs stream
            pl.BlockSpec((tile_b, action_dim), lambda i: (i, 0)),   # action stream
            pl.BlockSpec((obs_dim, n_hid), const2d),                # W1_obs
            pl.BlockSpec((action_dim, n_hid), const2d),             # W1_act
            pl.BlockSpec((1, n_hid), const2d),                      # b1
            pl.BlockSpec((n_hid, n_hid), const2d),                  # W2
            pl.BlockSpec((1, n_hid), const2d),                      # b2
            pl.BlockSpec((1, n_hid), const2d),                      # W3 row
            pl.BlockSpec((1, 1), const2d),                          # b3
        ],
        out_specs=pl.BlockSpec((1, tile_b), lambda i: (i, 0)),      # lane-dense rows
    )

    out = pl.pallas_call(
        functools.partial(_q_kernel, pnorm),
        out_shape=jax.ShapeDtypeStruct((n_tiles, tile_b), jnp.float32),
        grid_spec=grid_spec,
        compiler_params=pltpu.CompilerParams(
            dimension_semantics=("parallel",)),   # lets v7x's 2 TCs split the grid
        cost_estimate=cost,
    )(obs, action, w1_obs, w1_act, b1_r, w2, b2_r, w3_r, b3_r)

    return out.reshape(-1)[:B]   # .view(-1), drop batch padding


def orthogonal(key, shape, dtype=jnp.float32):
    """Deterministic orthogonal init (mirrors orthogonal_weight_init)."""
    n_rows, n_cols = shape
    a = jax.random.normal(key, (max(n_rows, n_cols), min(n_rows, n_cols)), dtype)
    q, r = jnp.linalg.qr(a)
    q = q * jnp.sign(jnp.diag(r))
    if n_rows < n_cols:
        q = q.T
    return q[:n_rows, :n_cols].astype(dtype)


def make_params(key, obs_dim, action_dim, n_hid):
    in_dim = obs_dim + action_dim
    k1, k2, k3 = jax.random.split(key, 3)
    # Stored as (in, out); biases zero-initialized.
    w1 = orthogonal(k1, (in_dim, n_hid))
    b1 = jnp.zeros((n_hid,), jnp.float32)
    w2 = orthogonal(k2, (n_hid, n_hid))
    b2 = jnp.zeros((n_hid,), jnp.float32)
    w3 = orthogonal(k3, (n_hid, 1))
    b3 = jnp.zeros((1,), jnp.float32)
    return (w1, b1, w2, b2, w3, b3)


def q_forward_ref(obs, action, params, pnorm=True):
    """Pure-JAX reference (matches the PyTorch module)."""
    x = jnp.concatenate([obs, action], axis=-1).astype(jnp.float32)
    w1, b1, w2, b2, w3, b3 = params
    h = x @ w1 + b1
    h = jnp.where(h > 0, h, LEAKY_SLOPE * h)
    h = h @ w2 + b2
    h = jnp.where(h > 0, h, LEAKY_SLOPE * h)
    if pnorm:
        h = h / jnp.linalg.norm(h, axis=1, keepdims=True)
    return (h @ w3 + b3).reshape(-1)


if __name__ == "__main__":
    obs_dim, action_dim, n_hid, batch = 12, 4, 32, 8

    key = jax.random.PRNGKey(0)
    k_obs, k_act, k_par = jax.random.split(key, 3)
    obs = jax.random.normal(k_obs, (batch, obs_dim), jnp.float32)
    action = jax.random.normal(k_act, (batch, action_dim), jnp.float32)
    params = make_params(k_par, obs_dim, action_dim, n_hid)

    ok = True
    for pnorm in (True, False):
        q_vals = q_forward(obs, action, params, pnorm=pnorm)
        jax.block_until_ready(q_vals)
        q_ref = q_forward_ref(obs, action, params, pnorm=pnorm)
        ok &= (q_vals.shape == (batch,))
        ok &= bool(jnp.allclose(q_vals, q_ref, atol=1e-4, rtol=1e-4))

    assert ok
    print("KERNEL_OK")
</pallas_src>

<mosaic_0001>
module attributes {stable_mosaic.version = 11 : i64} {
  func.func @_q_kernel(%arg0: i32, %arg1: memref<128x12xf32, #tpu.memory_space<vmem>>, %arg2: memref<128x4xf32, #tpu.memory_space<vmem>>, %arg3: memref<12x32xf32, #tpu.memory_space<vmem>>, %arg4: memref<4x32xf32, #tpu.memory_space<vmem>>, %arg5: memref<1x32xf32, #tpu.memory_space<vmem>>, %arg6: memref<32x32xf32, #tpu.memory_space<vmem>>, %arg7: memref<1x32xf32, #tpu.memory_space<vmem>>, %arg8: memref<1x32xf32, #tpu.memory_space<vmem>>, %arg9: memref<1x1xf32, #tpu.memory_space<vmem>>, %arg10: memref<1x128xf32, #tpu.memory_space<vmem>>) attributes {dimension_semantics = [#tpu.dimension_semantics<parallel>], iteration_bounds = array<i64: 1>, scalar_prefetch = 0 : i64, scratch_operands = 0 : i64, tpu.core_type = #tpu.core_type<tc>, window_params = [{transform_indices = @transform_0, window_bounds = array<i64: 128, 12>}, {transform_indices = @transform_1, window_bounds = array<i64: 128, 4>}, {pipeline_mode = #tpu.pipeline_mode<synchronous>, transform_indices = @transform_2, window_bounds = array<i64: 12, 32>}, {pipeline_mode = #tpu.pipeline_mode<synchronous>, transform_indices = @transform_3, window_bounds = array<i64: 4, 32>}, {pipeline_mode = #tpu.pipeline_mode<synchronous>, transform_indices = @transform_4, window_bounds = array<i64: 1, 32>}, {pipeline_mode = #tpu.pipeline_mode<synchronous>, transform_indices = @transform_5, window_bounds = array<i64: 32, 32>}, {pipeline_mode = #tpu.pipeline_mode<synchronous>, transform_indices = @transform_6, window_bounds = array<i64: 1, 32>}, {pipeline_mode = #tpu.pipeline_mode<synchronous>, transform_indices = @transform_7, window_bounds = array<i64: 1, 32>}, {pipeline_mode = #tpu.pipeline_mode<synchronous>, transform_indices = @transform_8, window_bounds = array<i64: 1, 1>}, {transform_indices = @transform_9, window_bounds = array<i64: 1, 128>}]} {
    %c0 = arith.constant 0 : index
    %c0_0 = arith.constant 0 : index
    %0 = vector.load %arg1[%c0, %c0_0] : memref<128x12xf32, #tpu.memory_space<vmem>>, vector<128x12xf32>
    %c0_1 = arith.constant 0 : index
    %c0_2 = arith.constant 0 : index
    %1 = vector.load %arg3[%c0_1, %c0_2] : memref<12x32xf32, #tpu.memory_space<vmem>>, vector<12x32xf32>
    %cst = arith.constant dense<0.000000e+00> : vector<128x32xf32>
    %2 = tpu.matmul %0, %1, %cst {dimension_numbers = #tpu.dot_dimension_numbers<[1], [0], [0], [1], [0, 0, 1, 1], [], []>} : vector<128x12xf32>, vector<12x32xf32>, vector<128x32xf32> -> vector<128x32xf32>
    %c0_3 = arith.constant 0 : index
    %c0_4 = arith.constant 0 : index
    %3 = vector.load %arg2[%c0_3, %c0_4] : memref<128x4xf32, #tpu.memory_space<vmem>>, vector<128x4xf32>
    %c0_5 = arith.constant 0 : index
    %c0_6 = arith.constant 0 : index
    %4 = vector.load %arg4[%c0_5, %c0_6] : memref<4x32xf32, #tpu.memory_space<vmem>>, vector<4x32xf32>
    %cst_7 = arith.constant dense<0.000000e+00> : vector<128x32xf32>
    %5 = tpu.matmul %3, %4, %cst_7 {dimension_numbers = #tpu.dot_dimension_numbers<[1], [0], [0], [1], [0, 0, 1, 1], [], []>} : vector<128x4xf32>, vector<4x32xf32>, vector<128x32xf32> -> vector<128x32xf32>
    %6 = arith.addf %2, %5 : vector<128x32xf32>
    %c0_8 = arith.constant 0 : index
    %c0_9 = arith.constant 0 : index
    %7 = vector.load %arg5[%c0_8, %c0_9] : memref<1x32xf32, #tpu.memory_space<vmem>>, vector<1x32xf32>
    %8 = vector.broadcast %7 : vector<1x32xf32> to vector<128x32xf32>
    %9 = arith.addf %6, %8 : vector<128x32xf32>
    %cst_10 = arith.constant 0.000000e+00 : f32
    %10 = vector.broadcast %cst_10 : f32 to vector<128x32xf32>
    %11 = arith.cmpf ogt, %9, %10 : vector<128x32xf32>
    %cst_11 = arith.constant 0.00999999977 : f32
    %12 = vector.broadcast %cst_11 : f32 to vector<128x32xf32>
    %13 = arith.mulf %12, %9 : vector<128x32xf32>
    %14 = arith.select %11, %9, %13 : vector<128x32xi1>, vector<128x32xf32>
    %c0_12 = arith.constant 0 : index
    %c0_13 = arith.constant 0 : index
    %15 = vector.load %arg6[%c0_12, %c0_13] : memref<32x32xf32, #tpu.memory_space<vmem>>, vector<32x32xf32>
    %cst_14 = arith.constant dense<0.000000e+00> : vector<128x32xf32>
    %16 = tpu.matmul %14, %15, %cst_14 {dimension_numbers = #tpu.dot_dimension_numbers<[1], [0], [0], [1], [0, 0, 1, 1], [], []>} : vector<128x32xf32>, vector<32x32xf32>, vector<128x32xf32> -> vector<128x32xf32>
    %c0_15 = arith.constant 0 : index
    %c0_16 = arith.constant 0 : index
    %17 = vector.load %arg7[%c0_15, %c0_16] : memref<1x32xf32, #tpu.memory_space<vmem>>, vector<1x32xf32>
    %18 = vector.broadcast %17 : vector<1x32xf32> to vector<128x32xf32>
    %19 = arith.addf %16, %18 : vector<128x32xf32>
    %cst_17 = arith.constant 0.000000e+00 : f32
    %20 = vector.broadcast %cst_17 : f32 to vector<128x32xf32>
    %21 = arith.cmpf ogt, %19, %20 : vector<128x32xf32>
    %cst_18 = arith.constant 0.00999999977 : f32
    %22 = vector.broadcast %cst_18 : f32 to vector<128x32xf32>
    %23 = arith.mulf %22, %19 : vector<128x32xf32>
    %24 = arith.select %21, %19, %23 : vector<128x32xi1>, vector<128x32xf32>
    %25 = arith.mulf %24, %24 : vector<128x32xf32>
    %cst_19 = arith.constant dense<0.000000e+00> : vector<128xf32>
    %26 = vector.multi_reduction <add>, %25, %cst_19 [1] : vector<128x32xf32> to vector<128xf32>
    %27 = vector.shape_cast %26 : vector<128xf32> to vector<128x1xf32>
    %cst_20 = arith.constant 9.99999996E-13 : f32
    %28 = vector.broadcast %cst_20 : f32 to vector<128x1xf32>
    %29 = arith.addf %27, %28 : vector<128x1xf32>
    %30 = math.rsqrt %29 : vector<128x1xf32>
    %31 = vector.broadcast %30 : vector<128x1xf32> to vector<128x32xf32>
    %32 = arith.mulf %24, %31 : vector<128x32xf32>
    %c0_21 = arith.constant 0 : index
    %c0_22 = arith.constant 0 : index
    %33 = vector.load %arg8[%c0_21, %c0_22] : memref<1x32xf32, #tpu.memory_space<vmem>>, vector<1x32xf32>
    %cst_23 = arith.constant dense<0.000000e+00> : vector<1x128xf32>
    %34 = tpu.matmul %33, %32, %cst_23 {dimension_numbers = #tpu.dot_dimension_numbers<[1], [1], [0], [0], [0, 0, 1, 0], [], []>} : vector<1x32xf32>, vector<128x32xf32>, vector<1x128xf32> -> vector<1x128xf32>
    %c0_24 = arith.constant 0 : index
    %c0_25 = arith.constant 0 : index
    %35 = vector.load %arg9[%c0_24, %c0_25] : memref<1x1xf32, #tpu.memory_space<vmem>>, vector<1x1xf32>
    %36 = vector.broadcast %35 : vector<1x1xf32> to vector<1x128xf32>
    %37 = arith.addf %34, %36 : vector<1x128xf32>
    %c0_26 = arith.constant 0 : index
    %c0_27 = arith.constant 0 : index
    %38 = vector.load %arg10[%c0_26, %c0_27] : memref<1x128xf32, #tpu.memory_space<vmem>>, vector<1x128xf32>
    tpu.vector_store %arg10[%c0_26, %c0_27], %37 {strides = array<i32>} : memref<1x128xf32, #tpu.memory_space<vmem>>, vector<1x128xf32>,
    return
  }
  func.func @transform_0(%arg0: i32) -> (i32, i32) {
    %c0_i32 = arith.constant 0 : i32
    %c0_i32_0 = arith.constant 0 : i32
    return %arg0, %c0_i32 : i32, i32
  }
  func.func @transform_1(%arg0: i32) -> (i32, i32) {
    %c0_i32 = arith.constant 0 : i32
    %c0_i32_0 = arith.constant 0 : i32
    return %arg0, %c0_i32 : i32, i32
  }
  func.func @transform_2(%arg0: i32) -> (i32, i32) {
    %c0_i32 = arith.constant 0 : i32
    %c0_i32_0 = arith.constant 0 : i32
    %c0_i32_1 = arith.constant 0 : i32
    return %c0_i32, %c0_i32_0 : i32, i32
  }
  func.func @transform_3(%arg0: i32) -> (i32, i32) {
    %c0_i32 = arith.constant 0 : i32
    %c0_i32_0 = arith.constant 0 : i32
    %c0_i32_1 = arith.constant 0 : i32
    return %c0_i32, %c0_i32_0 : i32, i32
  }
  func.func @transform_4(%arg0: i32) -> (i32, i32) {
    %c0_i32 = arith.constant 0 : i32
    %c0_i32_0 = arith.constant 0 : i32
    %c0_i32_1 = arith.constant 0 : i32
    return %c0_i32, %c0_i32_0 : i32, i32
  }
  func.func @transform_5(%arg0: i32) -> (i32, i32) {
    %c0_i32 = arith.constant 0 : i32
    %c0_i32_0 = arith.constant 0 : i32
    %c0_i32_1 = arith.constant 0 : i32
    return %c0_i32, %c0_i32_0 : i32, i32
  }
  func.func @transform_6(%arg0: i32) -> (i32, i32) {
    %c0_i32 = arith.constant 0 : i32
    %c0_i32_0 = arith.constant 0 : i32
    %c0_i32_1 = arith.constant 0 : i32
    return %c0_i32, %c0_i32_0 : i32, i32
  }
  func.func @transform_7(%arg0: i32) -> (i32, i32) {
    %c0_i32 = arith.constant 0 : i32
    %c0_i32_0 = arith.constant 0 : i32
    %c0_i32_1 = arith.constant 0 : i32
    return %c0_i32, %c0_i32_0 : i32, i32
  }
  func.func @transform_8(%arg0: i32) -> (i32, i32) {
    %c0_i32 = arith.constant 0 : i32
    %c0_i32_0 = arith.constant 0 : i32
    %c0_i32_1 = arith.constant 0 : i32
    return %c0_i32, %c0_i32_0 : i32, i32
  }
  func.func @transform_9(%arg0: i32) -> (i32, i32) {
    %c0_i32 = arith.constant 0 : i32
    %c0_i32_0 = arith.constant 0 : i32
    return %arg0, %c0_i32 : i32, i32
  }
}

</mosaic_0001>

<llo_original>
// kernel: tpu_custom_call.1
$region0: #{tpu_custom_call.1}
  #allocation0 [shape = 'u32[]', space=smem, size = 0x4, offset = 0x4, fixed_abs, tag = 'smem constant byte address 0x4 - core index']
  #allocation1 [shape = 'u32[144,128]{1,0:T(1,128)}', space=vmem, size = 0x12000, scoped, tag = 'internal scratch']
  #allocation2 [shape = 'f32[1,1]{1,0:T(1,128)S(1)}', space=vmem, size = 0x200, scoped, tag = 'scoped memory for tpu_custom_call.1']
  %s0 = inlined_call_operand.vmem [shape: f32[128,12], index: 0, kind: input, shape index: {}]
  %s1 = inlined_call_operand.vmem [shape: f32[128,4], index: 1, kind: input, shape index: {}]
  %s2 = inlined_call_operand.vmem [shape: f32[12,32], index: 2, kind: input, shape index: {}]
  %s3 = inlined_call_operand.vmem [shape: f32[4,32], index: 3, kind: input, shape index: {}]
  %s4 = inlined_call_operand.vmem [shape: f32[1,32], index: 4, kind: input, shape index: {}]
  %s5 = inlined_call_operand.vmem [shape: f32[32,32], index: 5, kind: input, shape index: {}]
  %s6 = inlined_call_operand.vmem [shape: f32[1,32], index: 6, kind: input, shape index: {}]
  %s7 = inlined_call_operand.vmem [shape: f32[1,32], index: 7, kind: input, shape index: {}]
  %s8 = inlined_call_operand.<no memory space> [shape: f32[1,1], index: 8, kind: input, shape index: {}]
  %s9 = inlined_call_operand.hbm [shape: f32[1,128], index: 9, kind: output, shape index: {}]
  %s10 = sld [smem:[#allocation0]]
  $region46: #{tpu_custom_call.1} parent=0
    _
  %s12 = ssub.s32 1, %s10
  %s13 = scalar_select 0, %s12, %s10
  %v14 = vstv %s8
  %15 = vst [vmem:[#allocation2] sm:$0x1] %v14
  $region1: #{tpu_custom_call.1} parent=0
    #allocation3 [shape = 'u8[512]{0}', space=vmem, size = 0x400, scoped, tag = 'output window, operand 0, single buffered']
    #allocation4 [shape = 's32[1]{0}', space=sflag, size = 0x4, scoped, tag = 'scoped memory for tpu_custom_call.1']
    %16 = vsyncpa [#allocation4], 0
    // Predicated region
    $region2: #{tpu_custom_call.1} parent=1 // pred_check
      _
    $region3: #{tpu_custom_call.1} parent=1 // pred_check_branch
      %18 = sbr.rel (0) target = $region5
    $region4: #{tpu_custom_call.1} parent=1 // pred_region
      _
    $region5: #{tpu_custom_call.1} parent=1 // pred_fallthru
      _
    // Predicated region
    $region6: #{tpu_custom_call.1} parent=1 // pred_check
      _
    $region7: #{tpu_custom_call.1} parent=1 // pred_check_branch
      %20 = sbr.rel (0) target = $region9
    $region8: #{tpu_custom_call.1} parent=1 // pred_region
      _
    $region9: #{tpu_custom_call.1} parent=1 // pred_fallthru
      _
    // Predicated region
    $region10: #{tpu_custom_call.1} parent=1 // pred_check
      _
    $region11: #{tpu_custom_call.1} parent=1 // pred_check_branch
      %22 = sbr.rel (0) target = $region13
    $region12: #{tpu_custom_call.1} parent=1 // pred_region
      _
    $region13: #{tpu_custom_call.1} parent=1 // pred_fallthru
      _
    // Predicated region
    $region14: #{tpu_custom_call.1} parent=1 // pred_check
      _
    $region15: #{tpu_custom_call.1} parent=1 // pred_check_branch
      %24 = sbr.rel (0) target = $region17
    $region16: #{tpu_custom_call.1} parent=1 // pred_region
      _
    $region17: #{tpu_custom_call.1} parent=1 // pred_fallthru
      _
    // Predicated region
    $region18: #{tpu_custom_call.1} parent=1 // pred_check
      _
    $region19: #{tpu_custom_call.1} parent=1 // pred_check_branch
      %26 = sbr.rel (0) target = $region21
    $region20: #{tpu_custom_call.1} parent=1 // pred_region
      _
    $region21: #{tpu_custom_call.1} parent=1 // pred_fallthru
      _
    // Predicated region
    $region22: #{tpu_custom_call.1} parent=1 // pred_check
      _
    $region23: #{tpu_custom_call.1} parent=1 // pred_check_branch
      %28 = sbr.rel (0) target = $region25
    $region24: #{tpu_custom_call.1} parent=1 // pred_region
      _
    $region25: #{tpu_custom_call.1} parent=1 // pred_fallthru
      _
    // Predicated region
    $region26: #{tpu_custom_call.1} parent=1 // pred_check
      _
    $region27: #{tpu_custom_call.1} parent=1 // pred_check_branch
      %30 = sbr.rel (0) target = $region29
    $region28: #{tpu_custom_call.1} parent=1 // pred_region
      _
    $region29: #{tpu_custom_call.1} parent=1 // pred_fallthru
      _
    // Predicated region
    $region30: #{tpu_custom_call.1} parent=1 // pred_check
      _
    $region31: #{tpu_custom_call.1} parent=1 // pred_check_branch
      %32 = sbr.rel (0) target = $region33
    $region32: #{tpu_custom_call.1} parent=1 // pred_region
      _
    $region33: #{tpu_custom_call.1} parent=1 // pred_fallthru
      _
    // Predicated region
    $region34: #{tpu_custom_call.1} parent=1 // pred_check
      _
    $region35: #{tpu_custom_call.1} parent=1 // pred_check_branch
      %34 = sbr.rel (0) target = $region37
    $region36: #{tpu_custom_call.1} parent=1 // pred_region
      _
    $region37: #{tpu_custom_call.1} parent=1 // pred_fallthru
      _
    %v35 = vld [vmem:[%s0] sm:$0xff]
    %v36 = vld [vmem:[%s0 + $0x8] sm:$0xff]
    %v37 = vld [vmem:[%s0 + $0x10] sm:$0xff]
    %v38 = vld [vmem:[%s0 + $0x18] sm:$0xff]
    %v39 = vld [vmem:[%s0 + $0x20] sm:$0xff]
    %v40 = vld [vmem:[%s0 + $0x28] sm:$0xff]
    %v41 = vld [vmem:[%s0 + $0x30] sm:$0xff]
    %v42 = vld [vmem:[%s0 + $0x38] sm:$0xff]
    %v43 = vld [vmem:[%s0 + $0x40] sm:$0xff]
    %v44 = vld [vmem:[%s0 + $0x48] sm:$0xff]
    %v45 = vld [vmem:[%s0 + $0x50] sm:$0xff]
    %v46 = vld [vmem:[%s0 + $0x58] sm:$0xff]
    %v47 = vld [vmem:[%s0 + $0x60] sm:$0xff]
    %v48 = vld [vmem:[%s0 + $0x68] sm:$0xff]
    %v49 = vld [vmem:[%s0 + $0x70] sm:$0xff]
    %v50 = vld [vmem:[%s0 + $0x78] sm:$0xff]
    %v51 = vld [vmem:[%s2] sm:$0xff]
    %v52 = vld [vmem:[%s2 + $0x8] sm:$0xf]
    %v53 = vld [vmem:[%s1] sm:$0xff]
    %v54 = vld [vmem:[%s1 + $0x8] sm:$0xff]
    %v55 = vld [vmem:[%s1 + $0x10] sm:$0xff]
    %v56 = vld [vmem:[%s1 + $0x18] sm:$0xff]
    %v57 = vld [vmem:[%s1 + $0x20] sm:$0xff]
    %v58 = vld [vmem:[%s1 + $0x28] sm:$0xff]
    %v59 = vld [vmem:[%s1 + $0x30] sm:$0xff]
    %v60 = vld [vmem:[%s1 + $0x38] sm:$0xff]
    %v61 = vld [vmem:[%s1 + $0x40] sm:$0xff]
    %v62 = vld [vmem:[%s1 + $0x48] sm:$0xff]
    %v63 = vld [vmem:[%s1 + $0x50] sm:$0xff]
    %v64 = vld [vmem:[%s1 + $0x58] sm:$0xff]
    %v65 = vld [vmem:[%s1 + $0x60] sm:$0xff]
    %v66 = vld [vmem:[%s1 + $0x68] sm:$0xff]
    %v67 = vld [vmem:[%s1 + $0x70] sm:$0xff]
    %v68 = vld [vmem:[%s1 + $0x78] sm:$0xff]
    %v69 = vld [vmem:[%s3] sm:$0xf]
    %vm70 = vcmask 31744
    %v72 = vsel %vm70, %v53, 0
    %v75 = vsel %vm70, %v54, 0
    %v78 = vsel %vm70, %v55, 0
    %v81 = vsel %vm70, %v56, 0
    %v84 = vsel %vm70, %v57, 0
    %v87 = vsel %vm70, %v58, 0
    %v90 = vsel %vm70, %v59, 0
    %v93 = vsel %vm70, %v60, 0
    %v96 = vsel %vm70, %v61, 0
    %v99 = vsel %vm70, %v62, 0
    %v102 = vsel %vm70, %v63, 0
    %v105 = vsel %vm70, %v64, 0
    %v108 = vsel %vm70, %v65, 0
    %v111 = vsel %vm70, %v66, 0
    %v114 = vsel %vm70, %v67, 0
    %v117 = vsel %vm70, %v68, 0
    %vm119 = vcmask 1043456
    %v121 = vsel %vm119, %v69, 0
    %123 = vmatprep.subr.mxu0 0.0
    %124 = vmatpush1.msra.mxu0 %v121
    %125 = vmatprep.subr.mxu0 0.0
    %126 = vmatpush1.msra.mxu0 0.0
    %127 = vmatprep.subr.mxu0 0.0
    %128 = vmatpush1.msra.mxu0 0.0
    %129 = vmatprep.subr.mxu0 0.0
    %130 = vmatpush1.msra.mxu0 0.0
    %131 = vmatprep.subr.mxu0 0.0
    %132 = vmatpush1.msra.mxu0 0.0
    %133 = vmatprep.subr.mxu0 0.0
    %134 = vmatpush1.msra.mxu0 0.0
    %135 = vmatprep.subr.mxu0 0.0
    %136 = vmatpush1.msra.mxu0 0.0
    %137 = vmatprep.subr.mxu0 0.0
    %138 = vmatpush1.msra.mxu0 0.0
    %139 = vmatprep.subr.mxu0 0.0
    %140 = vmatpush1.msra.mxu0 0.0
    %141 = vmatprep.subr.mxu0 0.0
    %142 = vmatpush1.msra.mxu0 0.0
    %143 = vmatprep.subr.mxu0 0.0
    %144 = vmatpush1.msra.mxu0 0.0
    %145 = vmatprep.subr.mxu0 0.0
    %146 = vmatpush1.msra.mxu0 0.0
    %147 = vmatprep.subr.mxu0 0.0
    %148 = vmatpush1.msra.mxu0 0.0
    %149 = vmatprep.subr.mxu0 0.0
    %150 = vmatpush1.msra.mxu0 0.0
    %151 = vmatprep.subr.mxu0 0.0
    %152 = vmatpush1.msra.mxu0 0.0
    %153 = vmatprep.subr.mxu0 0.0
    %154 = vmatpush1.msra.mxu0 0.0
    %155 = vmatprep.subr.mxu0 0.0
    %156 = vmatpush1.msra.mxu0 0.0
    %157 = vmatprep.subr.mxu0 0.0
    %158 = vmatpush1.msra.mxu0 0.0
    %159 = vmatprep.subr.mxu0 0.0
    %160 = vmatpush1.msra.mxu0 0.0
    %161 = vmatprep.subr.mxu0 0.0
    %162 = vmatpush1.msra.mxu0 0.0
    %163 = vmatprep.subr.mxu0 0.0
    %164 = vmatpush1.msra.mxu0 0.0
    %165 = vmatprep.subr.mxu0 0.0
    %166 = vmatpush1.msra.mxu0 0.0
    %167 = vmatprep.subr.mxu0 0.0
    %168 = vmatpush1.msra.mxu0 0.0
    %169 = vmatprep.subr.mxu0 0.0
    %170 = vmatpush1.msra.mxu0 0.0
    %171 = vmatprep.subr.mxu0 0.0
    %172 = vmatpush1.msra.mxu0 0.0
    %173 = vmatprep.subr.mxu0 0.0
    %174 = vmatpush1.msra.mxu0 0.0
    %175 = vmatprep.subr.mxu0 0.0
    %176 = vmatpush1.msra.mxu0 0.0
    %177 = vmatprep.subr.mxu0 0.0
    %178 = vmatpush1.msra.mxu0 0.0
    %179 = vmatprep.subr.mxu0 0.0
    %180 = vmatpush1.msra.mxu0 0.0
    %181 = vmatprep.subr.mxu0 0.0
    %182 = vmatpush1.msra.mxu0 0.0
    %183 = vmatprep.subr.mxu0 0.0
    %184 = vmatpush1.msra.mxu0 0.0
    %185 = vmatprep.subr.mxu0 0.0
    %186 = vmatpush1.msra.mxu0 0.0
    %187 = vmatprep.mubr.f32.mxu0 0.0
    %188 = vmatmul.mubr.f32.gmra.mrb[0].mxu0 %v72
    %v189 = vpop.f32.mrb[0].mxu0
    %v190 = vadd.f32 0.0, %v189
    %v191 = vpop.f32.mrb[0].mxu0
    %192 = vmatprep.mubr.f32.mxu0 0.0
    %193 = vmatmul.mubr.f32.gmra.mrb[0].mxu0 %v75
    %v194 = vpop.f32.mrb[0].mxu0
    %v195 = vadd.f32 0.0, %v194
    %v196 = vpop.f32.mrb[0].mxu0
    %197 = vmatprep.mubr.f32.mxu0 0.0
    %198 = vmatmul.mubr.f32.gmra.mrb[0].mxu0 %v78
    %v199 = vpop.f32.mrb[0].mxu0
    %v200 = vadd.f32 0.0, %v199
    %v201 = vpop.f32.mrb[0].mxu0
    %202 = vmatprep.mubr.f32.mxu0 0.0
    %203 = vmatmul.mubr.f32.gmra.mrb[0].mxu0 %v81
    %v204 = vpop.f32.mrb[0].mxu0
    %v205 = vadd.f32 0.0, %v204
    %v206 = vpop.f32.mrb[0].mxu0
    %207 = vmatprep.mubr.f32.mxu0 0.0
    %208 = vmatmul.mubr.f32.gmra.mrb[0].mxu0 %v84
    %v209 = vpop.f32.mrb[0].mxu0
    %v210 = vadd.f32 0.0, %v209
    %v211 = vpop.f32.mrb[0].mxu0
    %212 = vmatprep.mubr.f32.mxu0 0.0
    %213 = vmatmul.mubr.f32.gmra.mrb[0].mxu0 %v87
    %v214 = vpop.f32.mrb[0].mxu0
    %v215 = vadd.f32 0.0, %v214
    %v216 = vpop.f32.mrb[0].mxu0
    %217 = vmatprep.mubr.f32.mxu0 0.0
    %218 = vmatmul.mubr.f32.gmra.mrb[0].mxu0 %v90
    %v219 = vpop.f32.mrb[0].mxu0
    %v220 = vadd.f32 0.0, %v219
    %v221 = vpop.f32.mrb[0].mxu0
    %222 = vmatprep.mubr.f32.mxu0 0.0
    %223 = vmatmul.mubr.f32.gmra.mrb[0].mxu0 %v93
    %v224 = vpop.f32.mrb[0].mxu0
    %v225 = vadd.f32 0.0, %v224
    %v226 = vpop.f32.mrb[0].mxu0
    %227 = vmatprep.mubr.f32.mxu0 0.0
    %228 = vmatmul.mubr.f32.gmra.mrb[0].mxu0 %v96
    %v229 = vpop.f32.mrb[0].mxu0
    %v230 = vadd.f32 0.0, %v229
    %v231 = vpop.f32.mrb[0].mxu0
    %232 = vmatprep.mubr.f32.mxu0 0.0
    %233 = vmatmul.mubr.f32.gmra.mrb[0].mxu0 %v99
    %v234 = vpop.f32.mrb[0].mxu0
    %v235 = vadd.f32 0.0, %v234
    %v236 = vpop.f32.mrb[0].mxu0
    %237 = vmatprep.mubr.f32.mxu0 0.0
    %238 = vmatmul.mubr.f32.gmra.mrb[0].mxu0 %v102
    %v239 = vpop.f32.mrb[0].mxu0
    %v240 = vadd.f32 0.0, %v239
    %v241 = vpop.f32.mrb[0].mxu0
    %242 = vmatprep.mubr.f32.mxu0 0.0
    %243 = vmatmul.mubr.f32.gmra.mrb[0].mxu0 %v105
    %v244 = vpop.f32.mrb[0].mxu0
    %v245 = vadd.f32 0.0, %v244
    %v246 = vpop.f32.mrb[0].mxu0
    %247 = vmatprep.mubr.f32.mxu0 0.0
    %248 = vmatmul.mubr.f32.gmra.mrb[0].mxu0 %v108
    %v249 = vpop.f32.mrb[0].mxu0
    %v250 = vadd.f32 0.0, %v249
    %v251 = vpop.f32.mrb[0].mxu0
    %252 = vmatprep.mubr.f32.mxu0 0.0
    %253 = vmatmul.mubr.f32.gmra.mrb[0].mxu0 %v111
    %v254 = vpop.f32.mrb[0].mxu0
    %v255 = vadd.f32 0.0, %v254
    %v256 = vpop.f32.mrb[0].mxu0
    %257 = vmatprep.mubr.f32.mxu0 0.0
    %258 = vmatmul.mubr.f32.gmra.mrb[0].mxu0 %v114
    %v259 = vpop.f32.mrb[0].mxu0
    %v260 = vadd.f32 0.0, %v259
    %v261 = vpop.f32.mrb[0].mxu0
    %262 = vmatprep.mubr.f32.mxu0 0.0
    %263 = vmatmul.mubr.f32.gmra.mrb[0].mxu0 %v117
    %v264 = vpop.f32.mrb[0].mxu0
    %v265 = vadd.f32 0.0, %v264
    %v266 = vpop.f32.mrb[0].mxu0
    %267 = vdwg.mxu0
    %vm268 = vcmask 97280
    %v270 = vsel %vm268, %v35, 0
    %v273 = vsel %vm268, %v36, 0
    %v276 = vsel %vm268, %v37, 0
    %v279 = vsel %vm268, %v38, 0
    %v282 = vsel %vm268, %v39, 0
    %v285 = vsel %vm268, %v40, 0
    %v288 = vsel %vm268, %v41, 0
    %v291 = vsel %vm268, %v42, 0
    %v294 = vsel %vm268, %v43, 0
    %v297 = vsel %vm268, %v44, 0
    %v300 = vsel %vm268, %v45, 0
    %v303 = vsel %vm268, %v46, 0
    %v306 = vsel %vm268, %v47, 0
    %v309 = vsel %vm268, %v48, 0
    %v312 = vsel %vm268, %v49, 0
    %v315 = vsel %vm268, %v50, 0
    %v318 = vsel %vm119, %v52, 0
    %320 = vmatprep.subr.mxu0 0.0
    %321 = vmatpush1.msra.mxu0 %v51
    %322 = vmatprep.subr.mxu0 0.0
    %323 = vmatpush1.msra.mxu0 %v318
    %324 = vmatprep.subr.mxu0 0.0
    %325 = vmatpush1.msra.mxu0 0.0
    %326 = vmatprep.subr.mxu0 0.0
    %327 = vmatpush1.msra.mxu0 0.0
    %328 = vmatprep.subr.mxu0 0.0
    %329 = vmatpush1.msra.mxu0 0.0
    %330 = vmatprep.subr.mxu0 0.0
    %331 = vmatpush1.msra.mxu0 0.0
    %332 = vmatprep.subr.mxu0 0.0
    %333 = vmatpush1.msra.mxu0 0.0
    %334 = vmatprep.subr.mxu0 0.0
    %335 = vmatpush1.msra.mxu0 0.0
    %336 = vmatprep.subr.mxu0 0.0
    %337 = vmatpush1.msra.mxu0 0.0
    %338 = vmatprep.subr.mxu0 0.0
    %339 = vmatpush1.msra.mxu0 0.0
    %340 = vmatprep.subr.mxu0 0.0
    %341 = vmatpush1.msra.mxu0 0.0
    %342 = vmatprep.subr.mxu0 0.0
    %343 = vmatpush1.msra.mxu0 0.0
    %344 = vmatprep.subr.mxu0 0.0
    %345 = vmatpush1.msra.mxu0 0.0
    %346 = vmatprep.subr.mxu0 0.0
    %347 = vmatpush1.msra.mxu0 0.0
    %348 = vmatprep.subr.mxu0 0.0
    %349 = vmatpush1.msra.mxu0 0.0
    %350 = vmatprep.subr.mxu0 0.0
    %351 = vmatpush1.msra.mxu0 0.0
    %352 = vmatprep.subr.mxu0 0.0
    %353 = vmatpush1.msra.mxu0 0.0
    %354 = vmatprep.subr.mxu0 0.0
    %355 = vmatpush1.msra.mxu0 0.0
    %356 = vmatprep.subr.mxu0 0.0
    %357 = vmatpush1.msra.mxu0 0.0
    %358 = vmatprep.subr.mxu0 0.0
    %359 = vmatpush1.msra.mxu0 0.0
    %360 = vmatprep.subr.mxu0 0.0
    %361 = vmatpush1.msra.mxu0 0.0
    %362 = vmatprep.subr.mxu0 0.0
    %363 = vmatpush1.msra.mxu0 0.0
    %364 = vmatprep.subr.mxu0 0.0
    %365 = vmatpush1.msra.mxu0 0.0
    %366 = vmatprep.subr.mxu0 0.0
    %367 = vmatpush1.msra.mxu0 0.0
    %368 = vmatprep.subr.mxu0 0.0
    %369 = vmatpush1.msra.mxu0 0.0
    %370 = vmatprep.subr.mxu0 0.0
    %371 = vmatpush1.msra.mxu0 0.0
    %372 = vmatprep.subr.mxu0 0.0
    %373 = vmatpush1.msra.mxu0 0.0
    %374 = vmatprep.subr.mxu0 0.0
    %375 = vmatpush1.msra.mxu0 0.0
    %376 = vmatprep.subr.mxu0 0.0
    %377 = vmatpush1.msra.mxu0 0.0
    %378 = vmatprep.subr.mxu0 0.0
    %379 = vmatpush1.msra.mxu0 0.0
    %380 = vmatprep.subr.mxu0 0.0
    %381 = vmatpush1.msra.mxu0 0.0
    %382 = vmatprep.subr.mxu0 0.0
    %383 = vmatpush1.msra.mxu0 0.0
    %384 = vmatprep.mubr.f32.mxu0 0.0
    %385 = vmatmul.mubr.f32.gmra.mrb[0].mxu0 %v270
    %v386 = vpop.f32.mrb[0].mxu0
    %v387 = vadd.f32 %v190, %v386
    %v388 = vpop.f32.mrb[0].mxu0
    %389 = vmatprep.mubr.f32.mxu0 0.0
    %390 = vmatmul.mubr.f32.gmra.mrb[0].mxu0 %v273
    %v391 = vpop.f32.mrb[0].mxu0
    %v392 = vadd.f32 %v195, %v391
    %v393 = vpop.f32.mrb[0].mxu0
    %394 = vmatprep.mubr.f32.mxu0 0.0
    %395 = vmatmul.mubr.f32.gmra.mrb[0].mxu0 %v276
    %v396 = vpop.f32.mrb[0].mxu0
    %v397 = vadd.f32 %v200, %v396
    %v398 = vpop.f32.mrb[0].mxu0
    %399 = vmatprep.mubr.f32.mxu0 0.0
    %400 = vmatmul.mubr.f32.gmra.mrb[0].mxu0 %v279
    %v401 = vpop.f32.mrb[0].mxu0
    %v402 = vadd.f32 %v205, %v401
    %v403 = vpop.f32.mrb[0].mxu0
    %404 = vmatprep.mubr.f32.mxu0 0.0
    %405 = vmatmul.mubr.f32.gmra.mrb[0].mxu0 %v282
    %v406 = vpop.f32.mrb[0].mxu0
    %v407 = vadd.f32 %v210, %v406
    %v408 = vpop.f32.mrb[0].mxu0
    %409 = vmatprep.mubr.f32.mxu0 0.0
    %410 = vmatmul.mubr.f32.gmra.mrb[0].mxu0 %v285
    %v411 = vpop.f32.mrb[0].mxu0
    %v412 = vadd.f32 %v215, %v411
    %v413 = vpop.f32.mrb[0].mxu0
    %414 = vmatprep.mubr.f32.mxu0 0.0
    %415 = vmatmul.mubr.f32.gmra.mrb[0].mxu0 %v288
    %v416 = vpop.f32.mrb[0].mxu0
    %v417 = vadd.f32 %v220, %v416
    %v418 = vpop.f32.mrb[0].mxu0
    %419 = vmatprep.mubr.f32.mxu0 0.0
    %420 = vmatmul.mubr.f32.gmra.mrb[0].mxu0 %v291
    %v421 = vpop.f32.mrb[0].mxu0
    %v422 = vadd.f32 %v225, %v421
    %v423 = vpop.f32.mrb[0].mxu0
    %424 = vmatprep.mubr.f32.mxu0 0.0
    %425 = vmatmul.mubr.f32.gmra.mrb[0].mxu0 %v294
    %v426 = vpop.f32.mrb[0].mxu0
    %v427 = vadd.f32 %v230, %v426
    %v428 = vpop.f32.mrb[0].mxu0
    %429 = vmatprep.mubr.f32.mxu0 0.0
    %430 = vmatmul.mubr.f32.gmra.mrb[0].mxu0 %v297
    %v431 = vpop.f32.mrb[0].mxu0
    %v432 = vadd.f32 %v235, %v431
    %v433 = vpop.f32.mrb[0].mxu0
    %434 = vmatprep.mubr.f32.mxu0 0.0
    %435 = vmatmul.mubr.f32.gmra.mrb[0].mxu0 %v300
    %v436 = vpop.f32.mrb[0].mxu0
    %v437 = vadd.f32 %v240, %v436
    %v438 = vpop.f32.mrb[0].mxu0
    %439 = vmatprep.mubr.f32.mxu0 0.0
    %440 = vmatmul.mubr.f32.gmra.mrb[0].mxu0 %v303
    %v441 = vpop.f32.mrb[0].mxu0
    %v442 = vadd.f32 %v245, %v441
    %v443 = vpop.f32.mrb[0].mxu0
    %444 = vmatprep.mubr.f32.mxu0 0.0
    %445 = vmatmul.mubr.f32.gmra.mrb[0].mxu0 %v306
    %v446 = vpop.f32.mrb[0].mxu0
    %v447 = vadd.f32 %v250, %v446
    %v448 = vpop.f32.mrb[0].mxu0
    %449 = vmatprep.mubr.f32.mxu0 0.0
    %450 = vmatmul.mubr.f32.gmra.mrb[0].mxu0 %v309
    %v451 = vpop.f32.mrb[0].mxu0
    %v452 = vadd.f32 %v255, %v451
    %v453 = vpop.f32.mrb[0].mxu0
    %454 = vmatprep.mubr.f32.mxu0 0.0
    %455 = vmatmul.mubr.f32.gmra.mrb[0].mxu0 %v312
    %v456 = vpop.f32.mrb[0].mxu0
    %v457 = vadd.f32 %v260, %v456
    %v458 = vpop.f32.mrb[0].mxu0
    %459 = vmatprep.mubr.f32.mxu0 0.0
    %460 = vmatmul.mubr.f32.gmra.mrb[0].mxu0 %v315
    %v461 = vpop.f32.mrb[0].mxu0
    %v462 = vadd.f32 %v265, %v461
    %v463 = vpop.f32.mrb[0].mxu0
    %464 = vdwg.mxu0
    %v465 = vld [vmem:[%s4] sm:$0x1]
    %v467 = vlaneseq
    %v468 = vshrl.u32 %v467, 7
    %v469 = vsub.s32 0, %v468
    %v470 = vrot.slane %v465, %v469
    %v472 = vadd.f32 %v387, %v470
    %v473 = vadd.f32 %v392, %v470
    %v474 = vadd.f32 %v397, %v470
    %v475 = vadd.f32 %v402, %v470
    %v476 = vadd.f32 %v407, %v470
    %v477 = vadd.f32 %v412, %v470
    %v478 = vadd.f32 %v417, %v470
    %v479 = vadd.f32 %v422, %v470
    %v480 = vadd.f32 %v427, %v470
    %v481 = vadd.f32 %v432, %v470
    %v482 = vadd.f32 %v437, %v470
    %v483 = vadd.f32 %v442, %v470
    %v484 = vadd.f32 %v447, %v470
    %v485 = vadd.f32 %v452, %v470
    %v486 = vadd.f32 %v457, %v470
    %v487 = vadd.f32 %v462, %v470
    %vm488 = vcmp.gt.f32.partialorder %v472, 0.0
    %vm489 = vcmp.gt.f32.partialorder %v473, 0.0
    %vm490 = vcmp.gt.f32.partialorder %v474, 0.0
    %vm491 = vcmp.gt.f32.partialorder %v475, 0.0
    %vm492 = vcmp.gt.f32.partialorder %v476, 0.0
    %vm493 = vcmp.gt.f32.partialorder %v477, 0.0
    %vm494 = vcmp.gt.f32.partialorder %v478, 0.0
    %vm495 = vcmp.gt.f32.partialorder %v479, 0.0
    %vm496 = vcmp.gt.f32.partialorder %v480, 0.0
    %vm497 = vcmp.gt.f32.partialorder %v481, 0.0
    %vm498 = vcmp.gt.f32.partialorder %v482, 0.0
    %vm499 = vcmp.gt.f32.partialorder %v483, 0.0
    %vm500 = vcmp.gt.f32.partialorder %v484, 0.0
    %vm501 = vcmp.gt.f32.partialorder %v485, 0.0
    %vm502 = vcmp.gt.f32.partialorder %v486, 0.0
    %vm503 = vcmp.gt.f32.partialorder %v487, 0.0
    %v504 = vmul.f32 %v472, 0.01
    %v505 = vmul.f32 %v473, 0.01
    %v506 = vmul.f32 %v474, 0.01
    %v507 = vmul.f32 %v475, 0.01
    %v508 = vmul.f32 %v476, 0.01
    %v509 = vmul.f32 %v477, 0.01
    %v510 = vmul.f32 %v478, 0.01
    %v511 = vmul.f32 %v479, 0.01
    %v512 = vmul.f32 %v480, 0.01
    %v513 = vmul.f32 %v481, 0.01
    %v514 = vmul.f32 %v482, 0.01
    %v515 = vmul.f32 %v483, 0.01
    %v516 = vmul.f32 %v484, 0.01
    %v517 = vmul.f32 %v485, 0.01
    %v518 = vmul.f32 %v486, 0.01
    %v519 = vmul.f32 %v487, 0.01
    %v520 = vsel %vm488, %v472, %v504
    %v521 = vsel %vm489, %v473, %v505
    %v522 = vsel %vm490, %v474, %v506
    %v523 = vsel %vm491, %v475, %v507
    %v524 = vsel %vm492, %v476, %v508
    %v525 = vsel %vm493, %v477, %v509
    %v526 = vsel %vm494, %v478, %v510
    %v527 = vsel %vm495, %v479, %v511
    %v528 = vsel %vm496, %v480, %v512
    %v529 = vsel %vm497, %v481, %v513
    %v530 = vsel %vm498, %v482, %v514
    %v531 = vsel %vm499, %v483, %v515
    %v532 = vsel %vm500, %v484, %v516
    %v533 = vsel %vm501, %v485, %v517
    %v534 = vsel %vm502, %v486, %v518
    %v535 = vsel %vm503, %v487, %v519
    %v536 = vld [vmem:[%s5] sm:$0xff]
    %v537 = vld [vmem:[%s5 + $0x8] sm:$0xff]
    %v538 = vld [vmem:[%s5 + $0x10] sm:$0xff]
    %v539 = vld [vmem:[%s5 + $0x18] sm:$0xff]
    %v540 = vld [vmem:[%s6] sm:$0x1]
    %v542 = vlaneseq
    %v543 = vshrl.u32 %v542, 7
    %v544 = vsub.s32 0, %v543
    %v545 = vrot.slane %v540, %v544
    %vm547 = vcmask 261120
    %v549 = vsel %vm547, %v520, 0
    %v552 = vsel %vm547, %v521, 0
    %v555 = vsel %vm547, %v522, 0
    %v558 = vsel %vm547, %v523, 0
    %v561 = vsel %vm547, %v524, 0
    %v564 = vsel %vm547, %v525, 0
    %v567 = vsel %vm547, %v526, 0
    %v570 = vsel %vm547, %v527, 0
    %v573 = vsel %vm547, %v528, 0
    %v576 = vsel %vm547, %v529, 0
    %v579 = vsel %vm547, %v530, 0
    %v582 = vsel %vm547, %v531, 0
    %v585 = vsel %vm547, %v532, 0
    %v588 = vsel %vm547, %v533, 0
    %v591 = vsel %vm547, %v534, 0
    %v594 = vsel %vm547, %v535, 0
    %596 = vmatprep.subr.mxu0 0.0
    %597 = vmatpush1.msra.mxu0 %v536
    %598 = vmatprep.subr.mxu0 0.0
    %599 = vmatpush1.msra.mxu0 %v537
    %600 = vmatprep.subr.mxu0 0.0
    %601 = vmatpush1.msra.mxu0 %v538
    %602 = vmatprep.subr.mxu0 0.0
    %603 = vmatpush1.msra.mxu0 %v539
    %604 = vmatprep.subr.mxu0 0.0
    %605 = vmatpush1.msra.mxu0 0.0
    %606 = vmatprep.subr.mxu0 0.0
    %607 = vmatpush1.msra.mxu0 0.0
    %608 = vmatprep.subr.mxu0 0.0
    %609 = vmatpush1.msra.mxu0 0.0
    %610 = vmatprep.subr.mxu0 0.0
    %611 = vmatpush1.msra.mxu0 0.0
    %612 = vmatprep.subr.mxu0 0.0
    %613 = vmatpush1.msra.mxu0 0.0
    %614 = vmatprep.subr.mxu0 0.0
    %615 = vmatpush1.msra.mxu0 0.0
    %616 = vmatprep.subr.mxu0 0.0
    %617 = vmatpush1.msra.mxu0 0.0
    %618 = vmatprep.subr.mxu0 0.0
    %619 = vmatpush1.msra.mxu0 0.0
    %620 = vmatprep.subr.mxu0 0.0
    %621 = vmatpush1.msra.mxu0 0.0
    %622 = vmatprep.subr.mxu0 0.0
    %623 = vmatpush1.msra.mxu0 0.0
    %624 = vmatprep.subr.mxu0 0.0
    %625 = vmatpush1.msra.mxu0 0.0
    %626 = vmatprep.subr.mxu0 0.0
    %627 = vmatpush1.msra.mxu0 0.0
    %628 = vmatprep.subr.mxu0 0.0
    %629 = vmatpush1.msra.mxu0 0.0
    %630 = vmatprep.subr.mxu0 0.0
    %631 = vmatpush1.msra.mxu0 0.0
    %632 = vmatprep.subr.mxu0 0.0
    %633 = vmatpush1.msra.mxu0 0.0
    %634 = vmatprep.subr.mxu0 0.0
    %635 = vmatpush1.msra.mxu0 0.0
    %636 = vmatprep.subr.mxu0 0.0
    %637 = vmatpush1.msra.mxu0 0.0
    %638 = vmatprep.subr.mxu0 0.0
    %639 = vmatpush1.msra.mxu0 0.0
    %640 = vmatprep.subr.mxu0 0.0
    %641 = vmatpush1.msra.mxu0 0.0
    %642 = vmatprep.subr.mxu0 0.0
    %643 = vmatpush1.msra.mxu0 0.0
    %644 = vmatprep.subr.mxu0 0.0
    %645 = vmatpush1.msra.mxu0 0.0
    %646 = vmatprep.subr.mxu0 0.0
    %647 = vmatpush1.msra.mxu0 0.0
    %648 = vmatprep.subr.mxu0 0.0
    %649 = vmatpush1.msra.mxu0 0.0
    %650 = vmatprep.subr.mxu0 0.0
    %651 = vmatpush1.msra.mxu0 0.0
    %652 = vmatprep.subr.mxu0 0.0
    %653 = vmatpush1.msra.mxu0 0.0
    %654 = vmatprep.subr.mxu0 0.0
    %655 = vmatpush1.msra.mxu0 0.0
    %656 = vmatprep.subr.mxu0 0.0
    %657 = vmatpush1.msra.mxu0 0.0
    %658 = vmatprep.subr.mxu0 0.0
    %659 = vmatpush1.msra.mxu0 0.0
    %660 = vmatprep.mubr.f32.mxu0 0.0
    %661 = vmatmul.mubr.f32.gmra.mrb[0].mxu0 %v549
    %v662 = vpop.f32.mrb[0].mxu0
    %v663 = vadd.f32 %v545, %v662
    %v664 = vpop.f32.mrb[0].mxu0
    %665 = vmatprep.mubr.f32.mxu0 0.0
    %666 = vmatmul.mubr.f32.gmra.mrb[0].mxu0 %v552
    %v667 = vpop.f32.mrb[0].mxu0
    %v668 = vadd.f32 %v545, %v667
    %v669 = vpop.f32.mrb[0].mxu0
    %670 = vmatprep.mubr.f32.mxu0 0.0
    %671 = vmatmul.mubr.f32.gmra.mrb[0].mxu0 %v555
    %v672 = vpop.f32.mrb[0].mxu0
    %v673 = vadd.f32 %v545, %v672
    %v674 = vpop.f32.mrb[0].mxu0
    %675 = vmatprep.mubr.f32.mxu0 0.0
    %676 = vmatmul.mubr.f32.gmra.mrb[0].mxu0 %v558
    %v677 = vpop.f32.mrb[0].mxu0
    %v678 = vadd.f32 %v545, %v677
    %v679 = vpop.f32.mrb[0].mxu0
    %680 = vmatprep.mubr.f32.mxu0 0.0
    %681 = vmatmul.mubr.f32.gmra.mrb[0].mxu0 %v561
    %v682 = vpop.f32.mrb[0].mxu0
    %v683 = vadd.f32 %v545, %v682
    %v684 = vpop.f32.mrb[0].mxu0
    %685 = vmatprep.mubr.f32.mxu0 0.0
    %686 = vmatmul.mubr.f32.gmra.mrb[0].mxu0 %v564
    %v687 = vpop.f32.mrb[0].mxu0
    %v688 = vadd.f32 %v545, %v687
    %v689 = vpop.f32.mrb[0].mxu0
    %690 = vmatprep.mubr.f32.mxu0 0.0
    %691 = vmatmul.mubr.f32.gmra.mrb[0].mxu0 %v567
    %v692 = vpop.f32.mrb[0].mxu0
    %v693 = vadd.f32 %v545, %v692
    %v694 = vpop.f32.mrb[0].mxu0
    %695 = vmatprep.mubr.f32.mxu0 0.0
    %696 = vmatmul.mubr.f32.gmra.mrb[0].mxu0 %v570
    %v697 = vpop.f32.mrb[0].mxu0
    %v698 = vadd.f32 %v545, %v697
    %v699 = vpop.f32.mrb[0].mxu0
    %700 = vmatprep.mubr.f32.mxu0 0.0
    %701 = vmatmul.mubr.f32.gmra.mrb[0].mxu0 %v573
    %v702 = vpop.f32.mrb[0].mxu0
    %v703 = vadd.f32 %v545, %v702
    %v704 = vpop.f32.mrb[0].mxu0
    %705 = vmatprep.mubr.f32.mxu0 0.0
    %706 = vmatmul.mubr.f32.gmra.mrb[0].mxu0 %v576
    %v707 = vpop.f32.mrb[0].mxu0
    %v708 = vadd.f32 %v545, %v707
    %v709 = vpop.f32.mrb[0].mxu0
    %710 = vmatprep.mubr.f32.mxu0 0.0
    %711 = vmatmul.mubr.f32.gmra.mrb[0].mxu0 %v579
    %v712 = vpop.f32.mrb[0].mxu0
    %v713 = vadd.f32 %v545, %v712
    %v714 = vpop.f32.mrb[0].mxu0
    %715 = vmatprep.mubr.f32.mxu0 0.0
    %716 = vmatmul.mubr.f32.gmra.mrb[0].mxu0 %v582
    %v717 = vpop.f32.mrb[0].mxu0
    %v718 = vadd.f32 %v545, %v717
    %v719 = vpop.f32.mrb[0].mxu0
    %720 = vmatprep.mubr.f32.mxu0 0.0
    %721 = vmatmul.mubr.f32.gmra.mrb[0].mxu0 %v585
    %v722 = vpop.f32.mrb[0].mxu0
    %v723 = vadd.f32 %v545, %v722
    %v724 = vpop.f32.mrb[0].mxu0
    %725 = vmatprep.mubr.f32.mxu0 0.0
    %726 = vmatmul.mubr.f32.gmra.mrb[0].mxu0 %v588
    %v727 = vpop.f32.mrb[0].mxu0
    %v728 = vadd.f32 %v545, %v727
    %v729 = vpop.f32.mrb[0].mxu0
    %730 = vmatprep.mubr.f32.mxu0 0.0
    %731 = vmatmul.mubr.f32.gmra.mrb[0].mxu0 %v591
    %v732 = vpop.f32.mrb[0].mxu0
    %v733 = vadd.f32 %v545, %v732
    %v734 = vpop.f32.mrb[0].mxu0
    %735 = vmatprep.mubr.f32.mxu0 0.0
    %736 = vmatmul.mubr.f32.gmra.mrb[0].mxu0 %v594
    %v737 = vpop.f32.mrb[0].mxu0
    %v738 = vadd.f32 %v545, %v737
    %v739 = vpop.f32.mrb[0].mxu0
    %740 = vdwg.mxu0
    %vm741 = vcmp.gt.f32.partialorder %v663, 0.0
    %vm742 = vcmp.gt.f32.partialorder %v668, 0.0
    %vm743 = vcmp.gt.f32.partialorder %v673, 0.0
    %vm744 = vcmp.gt.f32.partialorder %v678, 0.0
    %vm745 = vcmp.gt.f32.partialorder %v683, 0.0
    %vm746 = vcmp.gt.f32.partialorder %v688, 0.0
    %vm747 = vcmp.gt.f32.partialorder %v693, 0.0
    %vm748 = vcmp.gt.f32.partialorder %v698, 0.0
    %vm749 = vcmp.gt.f32.partialorder %v703, 0.0
    %vm750 = vcmp.gt.f32.partialorder %v708, 0.0
    %vm751 = vcmp.gt.f32.partialorder %v713, 0.0
    %vm752 = vcmp.gt.f32.partialorder %v718, 0.0
    %vm753 = vcmp.gt.f32.partialorder %v723, 0.0
    %vm754 = vcmp.gt.f32.partialorder %v728, 0.0
    %vm755 = vcmp.gt.f32.partialorder %v733, 0.0
    %vm756 = vcmp.gt.f32.partialorder %v738, 0.0
    %v757 = vmul.f32 %v663, 0.01
    %v758 = vmul.f32 %v668, 0.01
    %v759 = vmul.f32 %v673, 0.01
    %v760 = vmul.f32 %v678, 0.01
    %v761 = vmul.f32 %v683, 0.01
    %v762 = vmul.f32 %v688, 0.01
    %v763 = vmul.f32 %v693, 0.01
    %v764 = vmul.f32 %v698, 0.01
    %v765 = vmul.f32 %v703, 0.01
    %v766 = vmul.f32 %v708, 0.01
    %v767 = vmul.f32 %v713, 0.01
    %v768 = vmul.f32 %v718, 0.01
    %v769 = vmul.f32 %v723, 0.01
    %v770 = vmul.f32 %v728, 0.01
    %v771 = vmul.f32 %v733, 0.01
    %v772 = vmul.f32 %v738, 0.01
    %v773 = vsel %vm741, %v663, %v757
    %v774 = vsel %vm742, %v668, %v758
    %v775 = vsel %vm743, %v673, %v759
    %v776 = vsel %vm744, %v678, %v760
    %v777 = vsel %vm745, %v683, %v761
    %v778 = vsel %vm746, %v688, %v762
    %v779 = vsel %vm747, %v693, %v763
    %v780 = vsel %vm748, %v698, %v764
    %v781 = vsel %vm749, %v703, %v765
    %v782 = vsel %vm750, %v708, %v766
    %v783 = vsel %vm751, %v713, %v767
    %v784 = vsel %vm752, %v718, %v768
    %v785 = vsel %vm753, %v723, %v769
    %v786 = vsel %vm754, %v728, %v770
    %v787 = vsel %vm755, %v733, %v771
    %v788 = vsel %vm756, %v738, %v772
    %v789 = vmul.f32 %v773, %v773
    %v790 = vmul.f32 %v774, %v774
    %v791 = vmul.f32 %v775, %v775
    %v792 = vmul.f32 %v776, %v776
    %v793 = vmul.f32 %v777, %v777
    %v794 = vmul.f32 %v778, %v778
    %v795 = vmul.f32 %v779, %v779
    %v796 = vmul.f32 %v780, %v780
    %v797 = vmul.f32 %v781, %v781
    %v798 = vmul.f32 %v782, %v782
    %v799 = vmul.f32 %v783, %v783
    %v800 = vmul.f32 %v784, %v784
    %v801 = vmul.f32 %v785, %v785
    %v802 = vmul.f32 %v786, %v786
    %v803 = vmul.f32 %v787, %v787
    %v804 = vmul.f32 %v788, %v788
    %v805 = vsel %vm547, %v789, 0.0
    %806 = vadd.xlane.f32.xlu0 %v805
    %v807 = vpop.xlane.xlu0 %806
    %v808 = vsel %vm547, %v790, 0.0
    %809 = vadd.xlane.f32.xlu0 %v808
    %v810 = vpop.xlane.xlu0 %809
    %v811 = vsel %vm547, %v791, 0.0
    %812 = vadd.xlane.f32.xlu0 %v811
    %v813 = vpop.xlane.xlu0 %812
    %v814 = vsel %vm547, %v792, 0.0
    %815 = vadd.xlane.f32.xlu0 %v814
    %v816 = vpop.xlane.xlu0 %815
    %v817 = vsel %vm547, %v793, 0.0
    %818 = vadd.xlane.f32.xlu0 %v817
    %v819 = vpop.xlane.xlu0 %818
    %v820 = vsel %vm547, %v794, 0.0
    %821 = vadd.xlane.f32.xlu0 %v820
    %v822 = vpop.xlane.xlu0 %821
    %v823 = vsel %vm547, %v795, 0.0
    %824 = vadd.xlane.f32.xlu0 %v823
    %v825 = vpop.xlane.xlu0 %824
    %v826 = vsel %vm547, %v796, 0.0
    %827 = vadd.xlane.f32.xlu0 %v826
    %v828 = vpop.xlane.xlu0 %827
    %v829 = vsel %vm547, %v797, 0.0
    %830 = vadd.xlane.f32.xlu0 %v829
    %v831 = vpop.xlane.xlu0 %830
    %v832 = vsel %vm547, %v798, 0.0
    %833 = vadd.xlane.f32.xlu0 %v832
    %v834 = vpop.xlane.xlu0 %833
    %v835 = vsel %vm547, %v799, 0.0
    %836 = vadd.xlane.f32.xlu0 %v835
    %v837 = vpop.xlane.xlu0 %836
    %v838 = vsel %vm547, %v800, 0.0
    %839 = vadd.xlane.f32.xlu0 %v838
    %v840 = vpop.xlane.xlu0 %839
    %v841 = vsel %vm547, %v801, 0.0
    %842 = vadd.xlane.f32.xlu0 %v841
    %v843 = vpop.xlane.xlu0 %842
    %v844 = vsel %vm547, %v802, 0.0
    %845 = vadd.xlane.f32.xlu0 %v844
    %v846 = vpop.xlane.xlu0 %845
    %v847 = vsel %vm547, %v803, 0.0
    %848 = vadd.xlane.f32.xlu0 %v847
    %v849 = vpop.xlane.xlu0 %848
    %v850 = vsel %vm547, %v804, 0.0
    %851 = vadd.xlane.f32.xlu0 %v850
    %v852 = vpop.xlane.xlu0 %851
    %v853 = vadd.f32 %v807, 1e-12
    %v854 = vadd.f32 %v810, 1e-12
    %v855 = vadd.f32 %v813, 1e-12
    %v856 = vadd.f32 %v816, 1e-12
    %v857 = vadd.f32 %v819, 1e-12
    %v858 = vadd.f32 %v822, 1e-12
    %v859 = vadd.f32 %v825, 1e-12
    %v860 = vadd.f32 %v828, 1e-12
    %v861 = vadd.f32 %v831, 1e-12
    %v862 = vadd.f32 %v834, 1e-12
    %v863 = vadd.f32 %v837, 1e-12
    %v864 = vadd.f32 %v840, 1e-12
    %v865 = vadd.f32 %v843, 1e-12
    %v866 = vadd.f32 %v846, 1e-12
    %v867 = vadd.f32 %v849, 1e-12
    %v868 = vadd.f32 %v852, 1e-12
    %v869 = vrsqrt.pop %v853
    %v870 = vrsqrt.pop %v854
    %v871 = vrsqrt.pop %v855
    %v872 = vrsqrt.pop %v856
    %v873 = vrsqrt.pop %v857
    %v874 = vrsqrt.pop %v858
    %v875 = vrsqrt.pop %v859
    %v876 = vrsqrt.pop %v860
    %v877 = vrsqrt.pop %v861
    %v878 = vrsqrt.pop %v862
    %v879 = vrsqrt.pop %v863
    %v880 = vrsqrt.pop %v864
    %v881 = vrsqrt.pop %v865
    %v882 = vrsqrt.pop %v866
    %v883 = vrsqrt.pop %v867
    %v884 = vrsqrt.pop %v868
    %v885 = vmul.f32 %v773, %v869
    %v886 = vmul.f32 %v774, %v870
    %v887 = vmul.f32 %v775, %v871
    %v888 = vmul.f32 %v776, %v872
    %v889 = vmul.f32 %v777, %v873
    %v890 = vmul.f32 %v778, %v874
    %v891 = vmul.f32 %v779, %v875
    %v892 = vmul.f32 %v780, %v876
    %v893 = vmul.f32 %v781, %v877
    %v894 = vmul.f32 %v782, %v878
    %v895 = vmul.f32 %v783, %v879
    %v896 = vmul.f32 %v784, %v880
    %v897 = vmul.f32 %v785, %v881
    %v898 = vmul.f32 %v786, %v882
    %v899 = vmul.f32 %v787, %v883
    %v900 = vmul.f32 %v788, %v884
    %v901 = vld [vmem:[%s7] sm:$0x1]
    %v902 = vld [vmem:[#allocation2] sm:$0x1]
    %904 = vset.pattern.permute.xlu0 0
    %905 = vperm.xlu0 %904, %v902
    %v906 = vpop.permute.xlu0 %905
    %v908 = vlaneseq
    %v909 = vshrl.u32 %v908, 7
    %v910 = vsub.s32 0, %v909
    %v911 = vrot.slane %v906, %v910
    %v913 = vsel %vm547, %v901, 0
    %v916 = vsel %vm547, %v885, 0
    %v919 = vsel %vm547, %v886, 0
    %v922 = vsel %vm547, %v887, 0
    %v925 = vsel %vm547, %v888, 0
    %v928 = vsel %vm547, %v889, 0
    %v931 = vsel %vm547, %v890, 0
    %v934 = vsel %vm547, %v891, 0
    %v937 = vsel %vm547, %v892, 0
    %v940 = vsel %vm547, %v893, 0
    %v943 = vsel %vm547, %v894, 0
    %v946 = vsel %vm547, %v895, 0
    %v949 = vsel %vm547, %v896, 0
    %v952 = vsel %vm547, %v897, 0
    %v955 = vsel %vm547, %v898, 0
    %v958 = vsel %vm547, %v899, 0
    %v961 = vsel %vm547, %v900, 0
    %963 = vmatprep.subr.mxu0 0.0
    %964 = vmatpush1.xpose.msra.mxu0 %v916
    %965 = vmatprep.subr.mxu0 0.0
    %966 = vmatpush1.xpose.msra.mxu0 %v919
    %967 = vmatprep.subr.mxu0 0.0
    %968 = vmatpush1.xpose.msra.mxu0 %v922
    %969 = vmatprep.subr.mxu0 0.0
    %970 = vmatpush1.xpose.msra.mxu0 %v925
    %971 = vmatprep.subr.mxu0 0.0
    %972 = vmatpush1.xpose.msra.mxu0 %v928
    %973 = vmatprep.subr.mxu0 0.0
    %974 = vmatpush1.xpose.msra.mxu0 %v931
    %975 = vmatprep.subr.mxu0 0.0
    %976 = vmatpush1.xpose.msra.mxu0 %v934
    %977 = vmatprep.subr.mxu0 0.0
    %978 = vmatpush1.xpose.msra.mxu0 %v937
    %979 = vmatprep.subr.mxu0 0.0
    %980 = vmatpush1.xpose.msra.mxu0 %v940
    %981 = vmatprep.subr.mxu0 0.0
    %982 = vmatpush1.xpose.msra.mxu0 %v943
    %983 = vmatprep.subr.mxu0 0.0
    %984 = vmatpush1.xpose.msra.mxu0 %v946
    %985 = vmatprep.subr.mxu0 0.0
    %986 = vmatpush1.xpose.msra.mxu0 %v949
    %987 = vmatprep.subr.mxu0 0.0
    %988 = vmatpush1.xpose.msra.mxu0 %v952
    %989 = vmatprep.subr.mxu0 0.0
    %990 = vmatpush1.xpose.msra.mxu0 %v955
    %991 = vmatprep.subr.mxu0 0.0
    %992 = vmatpush1.xpose.msra.mxu0 %v958
    %993 = vmatprep.subr.mxu0 0.0
    %994 = vmatpush1.xpose.msra.mxu0 %v961
    %995 = vmatprep.subr.mxu0 0.0
    %996 = vmatpush1.xpose.msra.mxu0 0.0
    %997 = vmatprep.subr.mxu0 0.0
    %998 = vmatpush1.xpose.msra.mxu0 0.0
    %999 = vmatprep.subr.mxu0 0.0
    %1000 = vmatpush1.xpose.msra.mxu0 0.0
    %1001 = vmatprep.subr.mxu0 0.0
    %1002 = vmatpush1.xpose.msra.mxu0 0.0
    %1003 = vmatprep.subr.mxu0 0.0
    %1004 = vmatpush1.xpose.msra.mxu0 0.0
    %1005 = vmatprep.subr.mxu0 0.0
    %1006 = vmatpush1.xpose.msra.mxu0 0.0
    %1007 = vmatprep.subr.mxu0 0.0
    %1008 = vmatpush1.xpose.msra.mxu0 0.0
    %1009 = vmatprep.subr.mxu0 0.0
    %1010 = vmatpush1.xpose.msra.mxu0 0.0
    %1011 = vmatprep.subr.mxu0 0.0
    %1012 = vmatpush1.xpose.msra.mxu0 0.0
    %1013 = vmatprep.subr.mxu0 0.0
    %1014 = vmatpush1.xpose.msra.mxu0 0.0
    %1015 = vmatprep.subr.mxu0 0.0
    %1016 = vmatpush1.xpose.msra.mxu0 0.0
    %1017 = vmatprep.subr.mxu0 0.0
    %1018 = vmatpush1.xpose.msra.mxu0 0.0
    %1019 = vmatprep.subr.mxu0 0.0
    %1020 = vmatpush1.xpose.msra.mxu0 0.0
    %1021 = vmatprep.subr.mxu0 0.0
    %1022 = vmatpush1.xpose.msra.mxu0 0.0
    %1023 = vmatprep.subr.mxu0 0.0
    %1024 = vmatpush1.xpose.msra.mxu0 0.0
    %1025 = vmatprep.subr.mxu0 0.0
    %1026 = vmatpush1.xpose.msra.mxu0 0.0
    %1027 = vmatprep.mubr.f32.mxu0 0.0
    %1028 = vmatmul.mubr.f32.gmra.mrb[0].mxu0 %v913
    %v1029 = vpop.f32.mrb[0].mxu0
    %v1030 = vadd.f32 %v911, %v1029
    %v1031 = vpop.f32.mrb[0].mxu0
    %1032 = vdwg.mxu0
    %1033 = vst [vmem:[#allocation3] sm:$0x1] %v1030
    // Predicated region
    $region38: #{tpu_custom_call.1} parent=1 // pred_check
      _
    $region39: #{tpu_custom_call.1} parent=1 // pred_check_branch
      %1035 = sbr.rel (0) target = $region41
    $region40: #{tpu_custom_call.1} parent=1 // pred_region
      %s1037 = ssub.s32 16, 16
      %1038 = vsyncadd [#allocation4], %s1037
      %s1040 = sshll.u32 [#allocation3], 4
      %s1041 = int_to_ptr.vmem [resolvable:$true] %s1040
      %1043 = dma.vmem_to_hbm [thread:$0]  %s1041, 16, %s9, [#allocation4]
    $region41: #{tpu_custom_call.1} parent=1 // pred_fallthru
      _
    // Predicated region
    $region42: #{tpu_custom_call.1} parent=1 // pred_check
      _
    $region43: #{tpu_custom_call.1} parent=1 // pred_check_branch
      %1045 = sbr.rel (0) target = $region45
    $region44: #{tpu_custom_call.1} parent=1 // pred_region
      %1046 = dma.done [#allocation4], 16
    $region45: #{tpu_custom_call.1} parent=1 // pred_fallthru
      _
    %1047 = vsyncpa [#allocation4], 1

</llo_original>
